<compile_context>
chip_gen: v7x
topology: tpu7x:2x2x1
jax: 0.10.0
libtpu: 0.0.40
codegen_flags: <defaults>
</compile_context>

<pallas_src>
import jax
import jax.numpy as jnp
from jax.experimental import pallas as pl
from jax.experimental.pallas import tpu as pltpu


def _vmem_limit_bytes():
    """~3/4 of physical VMEM: 48 MiB on v7x (64), 96 MiB on v5e/v6e (128)."""
    cap = 64 * 1024 * 1024
    try:
        cap = int(pltpu.get_tpu_info().vmem_capacity_bytes)
    except Exception:
        pass
    return (cap * 3) // 4


_VMEM_LIMIT = _vmem_limit_bytes()


def _tile(dim, target, align):
    """Largest tile <= target that divides dim (multiple of `align`); full dim if small."""
    if dim <= target:
        return dim
    t = (min(target, dim) // align) * align
    while t > align and dim % t:
        t -= align
    if t <= 0 or dim % t:
        return dim  # fall back to un-tiled (always legal)
    return t


# --------------------- tiled matmul (K reduction, bf16 -> f32 acc) ---------------------

def _matmul_kernel(x_ref, w_ref, o_ref, acc_ref):
    k = pl.program_id(2)

    @pl.when(k == 0)
    def _():
        acc_ref[...] = jnp.zeros_like(acc_ref)

    acc_ref[...] += jnp.dot(x_ref[...], w_ref[...], preferred_element_type=jnp.float32)

    @pl.when(k == pl.num_programs(2) - 1)
    def _():
        o_ref[...] = acc_ref[...].astype(o_ref.dtype)


def pallas_matmul(x, w, *, out_dtype=jnp.float32, tm=512, tn=512, tk=512):
    """x: (M, K) bf16, w: (K, N) bf16 -> (M, N) out_dtype."""
    M, K = x.shape
    _, N = w.shape
    tm = _tile(M, tm, 16)
    tn = _tile(N, tn, 128)
    tk = _tile(K, tk, 128)
    return pl.pallas_call(
        _matmul_kernel,
        out_shape=jax.ShapeDtypeStruct((M, N), out_dtype),
        grid=(M // tm, N // tn, K // tk),
        in_specs=[pl.BlockSpec((tm, tk), lambda i, j, k: (i, k)),
                  pl.BlockSpec((tk, tn), lambda i, j, k: (k, j))],
        out_specs=pl.BlockSpec((tm, tn), lambda i, j, k: (i, j)),
        scratch_shapes=[pltpu.VMEM((tm, tn), jnp.float32)],
        compiler_params=pltpu.CompilerParams(
            dimension_semantics=("parallel", "parallel", "arbitrary"),
            vmem_limit_bytes=_VMEM_LIMIT),
    )(x, w)


# --------------------- fused RMSNorm + projection (norm hoisted across N tiles) ---------------------

def _norm_matmul_kernel(x_ref, g_ref, w_ref, o_ref, xn_ref):
    j = pl.program_id(1)

    @pl.when(j == 0)
    def _():
        # T5LayerNorm (RMSNorm, no mean subtraction, eps=1e-6) in f32; cached as bf16.
        x = x_ref[...]
        var = jnp.mean(x * x, axis=-1, keepdims=True)
        xn_ref[...] = ((x * jax.lax.rsqrt(var + 1e-6)) * g_ref[...]).astype(xn_ref.dtype)

    o_ref[...] = jnp.dot(xn_ref[...], w_ref[...],
                         preferred_element_type=jnp.float32).astype(o_ref.dtype)


def pallas_norm_matmul(x, g, w, *, out_dtype=jnp.bfloat16, tm=256, tn=512):
    """x: (M, D) f32 residual, g: (D,) f32, w: (D, N) bf16 -> (M, N)."""
    M, D = x.shape
    _, N = w.shape
    tm = _tile(M, tm, 16)
    tn = _tile(N, tn, 128)
    return pl.pallas_call(
        _norm_matmul_kernel,
        out_shape=jax.ShapeDtypeStruct((M, N), out_dtype),
        grid=(M // tm, N // tn),
        in_specs=[pl.BlockSpec((tm, D), lambda i, j: (i, 0)),
                  pl.BlockSpec((1, D), lambda i, j: (0, 0)),
                  pl.BlockSpec((D, tn), lambda i, j: (0, j))],
        out_specs=pl.BlockSpec((tm, tn), lambda i, j: (i, j)),
        scratch_shapes=[pltpu.VMEM((tm, D), jnp.bfloat16)],
        compiler_params=pltpu.CompilerParams(
            dimension_semantics=("parallel", "arbitrary"),
            vmem_limit_bytes=_VMEM_LIMIT),
    )(x, g.reshape(1, D), w)


# --------------------- fused RMSNorm + DenseReluDense + residual (norm hoisted across d_ff tiles) ---------------------

def _norm_ff_kernel(x_ref, g_ref, wi_ref, wo_ref, o_ref, acc_ref, xn_ref):
    f = pl.program_id(1)

    @pl.when(f == 0)
    def _():
        x = x_ref[...]
        var = jnp.mean(x * x, axis=-1, keepdims=True)
        xn_ref[...] = ((x * jax.lax.rsqrt(var + 1e-6)) * g_ref[...]).astype(xn_ref.dtype)
        acc_ref[...] = jnp.zeros_like(acc_ref)

    h = jnp.dot(xn_ref[...], wi_ref[...], preferred_element_type=jnp.float32)
    h = jnp.maximum(h, 0.0).astype(wo_ref.dtype)
    acc_ref[...] += jnp.dot(h, wo_ref[...], preferred_element_type=jnp.float32)

    @pl.when(f == pl.num_programs(1) - 1)
    def _():
        o_ref[...] = x_ref[...] + acc_ref[...]   # residual fused into the epilogue


def pallas_norm_ff(x, g, wi, wo, *, tm=256, tf=512):
    """x: (M, D) f32, g: (D,) f32, wi: (D, F) bf16, wo: (F, D) bf16 -> (M, D) f32."""
    M, D = x.shape
    _, F = wi.shape
    tm = _tile(M, tm, 16)
    tf = _tile(F, tf, 128)
    return pl.pallas_call(
        _norm_ff_kernel,
        out_shape=jax.ShapeDtypeStruct((M, D), jnp.float32),
        grid=(M // tm, F // tf),
        in_specs=[pl.BlockSpec((tm, D), lambda i, f: (i, 0)),
                  pl.BlockSpec((1, D), lambda i, f: (0, 0)),
                  pl.BlockSpec((D, tf), lambda i, f: (0, f)),
                  pl.BlockSpec((tf, D), lambda i, f: (f, 0))],
        out_specs=pl.BlockSpec((tm, D), lambda i, f: (i, 0)),
        scratch_shapes=[pltpu.VMEM((tm, D), jnp.float32),
                        pltpu.VMEM((tm, D), jnp.bfloat16)],
        compiler_params=pltpu.CompilerParams(
            dimension_semantics=("parallel", "arbitrary"),
            vmem_limit_bytes=_VMEM_LIMIT),
    )(x, g.reshape(1, D), wi, wo)


# --------------------- fused attention + O-projection + residual (lane-dense I/O) ---------------------

def pallas_self_attention(qkv, bias, wo, res, *, num_heads, d_head):
    """qkv: (B, T, 3*H*Dh) bf16 (fused-projection layout), bias: (H, T, T) f32 shared over B,
       wo: (H*Dh, D) bf16, res: (B, T, D) f32  ->  res + attn_heads @ wo, (B, T, D) f32."""
    B, T, three_inner = qkv.shape
    inner = num_heads * d_head
    D = wo.shape[1]

    def kernel(qkv_ref, b_ref, wo_ref, r_ref, o_ref):
        qkv_b = qkv_ref[0]                                     # (T, 3*inner) bf16
        heads = []
        for h in range(num_heads):                             # per-head static lane slices
            q = qkv_b[:, h * d_head:(h + 1) * d_head]
            k = qkv_b[:, inner + h * d_head:inner + (h + 1) * d_head]
            v = qkv_b[:, 2 * inner + h * d_head:2 * inner + (h + 1) * d_head]
            # T5 attention: no 1/sqrt(d_head) scaling; rel-pos + causal bias added pre-softmax.
            s = jax.lax.dot_general(q, k, (((1,), (1,)), ((), ())),
                                    preferred_element_type=jnp.float32) + b_ref[h]
            s = s - jnp.max(s, axis=-1, keepdims=True)
            p = jnp.exp(s)
            # approx reciprocal (EUP): tiny relative error vs. f32 reference, standard for inference.
            inv = pl.reciprocal(jnp.sum(p, axis=-1, keepdims=True), approx=True)
            o = jnp.dot(p.astype(v.dtype), v, preferred_element_type=jnp.float32) * inv
            heads.append(o.astype(jnp.bfloat16))
        attn = jnp.concatenate(heads, axis=-1)                 # (T, inner) bf16, lane-dense
        o_ref[0] = r_ref[0] + jnp.dot(attn, wo_ref[...],
                                      preferred_element_type=jnp.float32)

    return pl.pallas_call(
        kernel,
        out_shape=jax.ShapeDtypeStruct((B, T, D), jnp.float32),
        grid=(B,),
        in_specs=[pl.BlockSpec((1, T, three_inner), lambda b: (b, 0, 0)),
                  # shared bias reused via index_map -> no (B,H,T,T) broadcast through HBM
                  pl.BlockSpec((num_heads, T, T), lambda b: (0, 0, 0)),
                  pl.BlockSpec((inner, D), lambda b: (0, 0)),
                  pl.BlockSpec((1, T, D), lambda b: (b, 0, 0))],
        out_specs=pl.BlockSpec((1, T, D), lambda b: (b, 0, 0)),
        compiler_params=pltpu.CompilerParams(
            dimension_semantics=("parallel",),
            vmem_limit_bytes=_VMEM_LIMIT),
    )(qkv, bias, wo, res)


def pallas_cross_attention(q, kv, wo, res, *, num_heads, d_head):
    """q: (B, T, H*Dh) bf16, kv: (B, S, 2*H*Dh) bf16, wo: (H*Dh, D) bf16, res: (B, T, D) f32.
       Cross-attention has no position bias and no padding mask -> no bias tensor at all."""
    B, T, inner = q.shape
    _, S, _ = kv.shape
    D = wo.shape[1]

    def kernel(q_ref, kv_ref, wo_ref, r_ref, o_ref):
        q_b = q_ref[0]                                         # (T, inner) bf16
        kv_b = kv_ref[0]                                       # (S, 2*inner) bf16
        heads = []
        for h in range(num_heads):
            qh = q_b[:, h * d_head:(h + 1) * d_head]
            kh = kv_b[:, h * d_head:(h + 1) * d_head]
            vh = kv_b[:, inner + h * d_head:inner + (h + 1) * d_head]
            s = jax.lax.dot_general(qh, kh, (((1,), (1,)), ((), ())),
                                    preferred_element_type=jnp.float32)
            s = s - jnp.max(s, axis=-1, keepdims=True)
            p = jnp.exp(s)
            inv = pl.reciprocal(jnp.sum(p, axis=-1, keepdims=True), approx=True)
            o = jnp.dot(p.astype(vh.dtype), vh, preferred_element_type=jnp.float32) * inv
            heads.append(o.astype(jnp.bfloat16))
        attn = jnp.concatenate(heads, axis=-1)                 # (T, inner) bf16, lane-dense
        o_ref[0] = r_ref[0] + jnp.dot(attn, wo_ref[...],
                                      preferred_element_type=jnp.float32)

    return pl.pallas_call(
        kernel,
        out_shape=jax.ShapeDtypeStruct((B, T, D), jnp.float32),
        grid=(B,),
        in_specs=[pl.BlockSpec((1, T, inner), lambda b: (b, 0, 0)),
                  pl.BlockSpec((1, S, 2 * inner), lambda b: (b, 0, 0)),
                  pl.BlockSpec((inner, D), lambda b: (0, 0)),
                  pl.BlockSpec((1, T, D), lambda b: (b, 0, 0))],
        out_specs=pl.BlockSpec((1, T, D), lambda b: (b, 0, 0)),
        compiler_params=pltpu.CompilerParams(
            dimension_semantics=("parallel",),
            vmem_limit_bytes=_VMEM_LIMIT),
    )(q, kv, wo, res)


# --------------------- JAX glue (T5 decoder semantics) ---------------------

def t5_relative_position_bucket(rel_pos, num_buckets=32, max_distance=128):
    """T5 bucket mapping for decoder self-attention (bidirectional=False)."""
    rp = -jnp.minimum(rel_pos, 0)                     # >= 0
    max_exact = num_buckets // 2
    is_small = rp < max_exact
    rp_f = jnp.maximum(rp.astype(jnp.float32), 1.0)   # clamp only protects the discarded branch
    val_if_large = max_exact + (
        jnp.log(rp_f / max_exact) / jnp.log(max_distance / max_exact)
        * (num_buckets - max_exact)
    ).astype(jnp.int32)
    val_if_large = jnp.minimum(val_if_large, num_buckets - 1)
    return jnp.where(is_small, rp, val_if_large)


def t5_self_attention_bias(rel_bias_table, q_len, k_len):
    """(H, Tq, Tk) = relative position bias + causal mask (-1e9 large-negative)."""
    ctx = jnp.arange(q_len)[:, None]
    mem = jnp.arange(k_len)[None, :]
    buckets = t5_relative_position_bucket(mem - ctx)          # (Tq, Tk)
    values = rel_bias_table[buckets]                          # (Tq, Tk, H)
    pos_bias = jnp.transpose(values, (2, 0, 1))               # (H, Tq, Tk)
    causal = mem <= ctx
    mask_bias = jnp.where(causal, 0.0, -1e9)
    return (pos_bias + mask_bias[None]).astype(jnp.float32)


def t5_decoder_lm_forward(params, decoder_input_ids, encoder_hidden_states):
    cfg = params["config"]
    B, T = decoder_input_ids.shape
    _, S, _ = encoder_hidden_states.shape
    D, H, Dh = cfg["d_model"], cfg["num_heads"], cfg["d_kv"]
    inner = H * Dh
    M = B * T

    # token embedding lookup (glue); residual stream kept in f32
    x = params["embed"][decoder_input_ids].astype(jnp.float32).reshape(M, D)
    enc = encoder_hidden_states.reshape(B * S, D).astype(jnp.bfloat16)

    # self-attn bias: relative-position bucket bias (layer 0, shared) + causal mask
    self_bias = t5_self_attention_bias(params["rel_bias"], T, T)     # (H, T, T)

    for lyr in params["layers"]:
        # --- T5LayerSelfAttention: fused RMSNorm+QKV, then fused attn + O-proj + residual ---
        qkv = pallas_norm_matmul(x, lyr["ln_self"], lyr["wqkv"])      # (M, 3*inner) bf16
        x = pallas_self_attention(qkv.reshape(B, T, 3 * inner), self_bias,
                                  lyr["wo_self"], x.reshape(B, T, D),
                                  num_heads=H, d_head=Dh).reshape(M, D)

        # --- T5LayerCrossAttention (norm applies to decoder stream only; no bias/mask) ---
        q = pallas_norm_matmul(x, lyr["ln_cross"], lyr["wq_cross"])   # (M, inner) bf16
        kv = pallas_matmul(enc, lyr["wkv_cross"], out_dtype=jnp.bfloat16)  # (B*S, 2*inner)
        x = pallas_cross_attention(q.reshape(B, T, inner),
                                   kv.reshape(B, S, 2 * inner),
                                   lyr["wo_cross"], x.reshape(B, T, D),
                                   num_heads=H, d_head=Dh).reshape(M, D)

        # --- T5LayerFF: fused RMSNorm + wi + ReLU + wo + residual (d_ff reduction tiled) ---
        x = pallas_norm_ff(x, lyr["ln_ff"], lyr["wi"], lyr["wo_ff"])

    # final RMSNorm fused into lm_head (nn.Linear, no bias); no d_model**-0.5 rescale
    logits = pallas_norm_matmul(x, params["final_ln"], params["lm_head"],
                                out_dtype=jnp.float32)
    return logits.reshape(B, T, cfg["vocab"])


# --------------------- deterministic parameter init ---------------------

def init_params(key, vocab=256, d_model=64, d_kv=16, num_heads=4, d_ff=128,
                num_layers=2, num_buckets=32):
    inner = num_heads * d_kv
    keys = list(jax.random.split(key, 4 + num_layers * 16))
    it = iter(keys)

    def w(shape, scale=0.05, dtype=jnp.bfloat16):
        return (scale * jax.random.normal(next(it), shape)).astype(dtype)

    layers = []
    for _ in range(num_layers):
        layers.append(dict(
            ln_self=jnp.ones((d_model,), jnp.float32),
            # fused Q|K|V projection weight (single matmul per block)
            wqkv=jnp.concatenate([w((d_model, inner)), w((d_model, inner)),
                                  w((d_model, inner))], axis=1),
            wo_self=w((inner, d_model)),
            ln_cross=jnp.ones((d_model,), jnp.float32),
            wq_cross=w((d_model, inner)),
            # fused cross K|V projection weight
            wkv_cross=jnp.concatenate([w((d_model, inner)), w((d_model, inner))], axis=1),
            wo_cross=w((inner, d_model)),
            ln_ff=jnp.ones((d_model,), jnp.float32),
            wi=w((d_model, d_ff)),
            wo_ff=w((d_ff, d_model)),
        ))

    return dict(
        config=dict(vocab=vocab, d_model=d_model, d_kv=d_kv,
                    num_heads=num_heads, d_ff=d_ff, num_layers=num_layers),
        embed=w((vocab, d_model), scale=1.0, dtype=jnp.float32),
        rel_bias=w((num_buckets, num_heads), scale=0.1, dtype=jnp.float32),
        final_ln=jnp.ones((d_model,), jnp.float32),
        lm_head=w((d_model, vocab)),
        layers=layers,
    )


# --------------------- demo ---------------------

if __name__ == "__main__":
    key = jax.random.PRNGKey(0)
    pk, ik, ek = jax.random.split(key, 3)

    params = init_params(pk)
    cfg = params["config"]

    B, T, S = 2, 8, 16
    decoder_input_ids = jax.random.randint(ik, (B, T), 0, cfg["vocab"], dtype=jnp.int32)
    encoder_hidden_states = jax.random.normal(ek, (B, S, cfg["d_model"]), dtype=jnp.float32)

    logits = t5_decoder_lm_forward(params, decoder_input_ids, encoder_hidden_states)
    logits = jax.block_until_ready(logits)

    assert logits.shape == (B, T, cfg["vocab"]), logits.shape
    assert bool(jnp.all(jnp.isfinite(logits)))
    print("KERNEL_OK")
</pallas_src>

<mosaic_0001>
module attributes {stable_mosaic.version = 11 : i64} {
  func.func @_norm_matmul_kernel(%arg0: i32, %arg1: i32, %arg2: memref<16x64xf32, #tpu.memory_space<vmem>>, %arg3: memref<1x64xf32, #tpu.memory_space<vmem>>, %arg4: memref<64x192xbf16, #tpu.memory_space<vmem>>, %arg5: memref<16x192xbf16, #tpu.memory_space<vmem>>, %arg6: memref<16x64xbf16, #tpu.memory_space<vmem>>) attributes {dimension_semantics = [#tpu.dimension_semantics<parallel>, #tpu.dimension_semantics<arbitrary>], iteration_bounds = array<i64: 1, 1>, scalar_prefetch = 0 : i64, scratch_operands = 1 : i64, tpu.core_type = #tpu.core_type<tc>, window_params = [{transform_indices = @transform_0, window_bounds = array<i64: 16, 64>}, {pipeline_mode = #tpu.pipeline_mode<synchronous>, transform_indices = @transform_1, window_bounds = array<i64: 1, 64>}, {transform_indices = @transform_2, window_bounds = array<i64: 64, 192>}, {transform_indices = @transform_3, window_bounds = array<i64: 16, 192>}]} {
    %c0_i32 = arith.constant 0 : i32
    %0 = arith.cmpi eq, %arg1, %c0_i32 : i32
    %1 = arith.extui %0 : i1 to i32
    %c0_i32_0 = arith.constant 0 : i32
    %2 = arith.cmpi ne, %1, %c0_i32_0 : i32
    scf.if %2 {
      %c0_6 = arith.constant 0 : index
      %c0_7 = arith.constant 0 : index
      %8 = vector.load %arg2[%c0_6, %c0_7] : memref<16x64xf32, #tpu.memory_space<vmem>>, vector<16x64xf32>
      %9 = arith.mulf %8, %8 : vector<16x64xf32>
      %cst_8 = arith.constant dense<0.000000e+00> : vector<16xf32>
      %10 = vector.multi_reduction <add>, %9, %cst_8 [1] : vector<16x64xf32> to vector<16xf32>
      %11 = vector.shape_cast %10 : vector<16xf32> to vector<16x1xf32>
      %cst_9 = arith.constant 6.400000e+01 : f32
      %12 = vector.broadcast %cst_9 : f32 to vector<16x1xf32>
      %13 = arith.divf %11, %12 : vector<16x1xf32>
      %cst_10 = arith.constant 9.99999997E-7 : f32
      %14 = vector.broadcast %cst_10 : f32 to vector<16x1xf32>
      %15 = arith.addf %13, %14 : vector<16x1xf32>
      %16 = math.rsqrt %15 : vector<16x1xf32>
      %17 = vector.broadcast %16 : vector<16x1xf32> to vector<16x64xf32>
      %18 = arith.mulf %8, %17 : vector<16x64xf32>
      %c0_11 = arith.constant 0 : index
      %c0_12 = arith.constant 0 : index
      %19 = vector.load %arg3[%c0_11, %c0_12] : memref<1x64xf32, #tpu.memory_space<vmem>>, vector<1x64xf32>
      %20 = vector.broadcast %19 : vector<1x64xf32> to vector<16x64xf32>
      %21 = arith.mulf %18, %20 : vector<16x64xf32>
      %22 = arith.truncf %21 : vector<16x64xf32> to vector<16x64xbf16>
      %c0_13 = arith.constant 0 : index
      %c0_14 = arith.constant 0 : index
      %23 = vector.load %arg6[%c0_13, %c0_14] : memref<16x64xbf16, #tpu.memory_space<vmem>>, vector<16x64xbf16>
      tpu.vector_store %arg6[%c0_13, %c0_14], %22 {strides = array<i32>} : memref<16x64xbf16, #tpu.memory_space<vmem>>, vector<16x64xbf16>,
    } else {
    }
    %c0 = arith.constant 0 : index
    %c0_1 = arith.constant 0 : index
    %3 = vector.load %arg6[%c0, %c0_1] : memref<16x64xbf16, #tpu.memory_space<vmem>>, vector<16x64xbf16>
    %c0_2 = arith.constant 0 : index
    %c0_3 = arith.constant 0 : index
    %4 = vector.load %arg4[%c0_2, %c0_3] : memref<64x192xbf16, #tpu.memory_space<vmem>>, vector<64x192xbf16>
    %cst = arith.constant dense<0.000000e+00> : vector<16x192xf32>
    %5 = tpu.matmul %3, %4, %cst {dimension_numbers = #tpu.dot_dimension_numbers<[1], [0], [0], [1], [0, 0, 1, 1], [], []>} : vector<16x64xbf16>, vector<64x192xbf16>, vector<16x192xf32> -> vector<16x192xf32>
    %6 = arith.truncf %5 : vector<16x192xf32> to vector<16x192xbf16>
    %c0_4 = arith.constant 0 : index
    %c0_5 = arith.constant 0 : index
    %7 = vector.load %arg5[%c0_4, %c0_5] : memref<16x192xbf16, #tpu.memory_space<vmem>>, vector<16x192xbf16>
    tpu.vector_store %arg5[%c0_4, %c0_5], %6 {strides = array<i32>} : memref<16x192xbf16, #tpu.memory_space<vmem>>, vector<16x192xbf16>,
    return
  }
  func.func @transform_0(%arg0: i32, %arg1: i32) -> (i32, i32) {
    %c0_i32 = arith.constant 0 : i32
    %c0_i32_0 = arith.constant 0 : i32
    return %arg0, %c0_i32 : i32, i32
  }
  func.func @transform_1(%arg0: i32, %arg1: i32) -> (i32, i32) {
    %c0_i32 = arith.constant 0 : i32
    %c0_i32_0 = arith.constant 0 : i32
    %c0_i32_1 = arith.constant 0 : i32
    return %c0_i32, %c0_i32_0 : i32, i32
  }
  func.func @transform_2(%arg0: i32, %arg1: i32) -> (i32, i32) {
    %c0_i32 = arith.constant 0 : i32
    %c0_i32_0 = arith.constant 0 : i32
    return %c0_i32, %arg1 : i32, i32
  }
  func.func @transform_3(%arg0: i32, %arg1: i32) -> (i32, i32) {
    %c0_i32 = arith.constant 0 : i32
    return %arg0, %arg1 : i32, i32
  }
}

</mosaic_0001>

<llo_original>
// kernel: tpu_custom_call.1
$region0: #{tpu_custom_call.1}
  #allocation0 [shape = 'u32[]', space=smem, size = 0x4, offset = 0x4, fixed_abs, tag = 'smem constant byte address 0x4 - core index']
  #allocation1 [shape = 'u32[144,128]{1,0:T(1,128)}', space=vmem, size = 0x12000, scoped, tag = 'internal scratch']
  #allocation2 [shape = 'bf16[16,64]{1,0:T(16,128)(2,1)}', space=vmem, size = 0x1000, scoped, tag = 'scratch operand']
  %s0 = inlined_call_operand.hbm [shape: f32[16,64], index: 0, kind: input, shape index: {}]
  %s1 = inlined_call_operand.vmem [shape: f32[1,64], index: 1, kind: input, shape index: {}]
  %s2 = inlined_call_operand.hbm [shape: bf16[64,192], index: 2, kind: input, shape index: {}]
  %s3 = inlined_call_operand.hbm [shape: bf16[16,192], index: 3, kind: output, shape index: {}]
  %s4 = sld [smem:[#allocation0]]
  $region34: #{tpu_custom_call.1} parent=0
    _
  %s6 = ssub.s32 1, %s4
  %s7 = scalar_select 0, %s6, %s4
  $region1: #{tpu_custom_call.1} parent=0
    #allocation3 [shape = 'u8[8192]{0}', space=vmem, size = 0x2000, scoped, tag = 'input window, operand 0, single buffered']
    #allocation4 [shape = 's32[1]{0}', space=sflag, size = 0x4, scoped, tag = 'scoped memory for tpu_custom_call.1']
    #allocation5 [shape = 's32[1]{0}', space=sflag, size = 0x4, scoped, tag = 'scoped memory for tpu_custom_call.1']
    #allocation6 [shape = 'u8[32768]{0}', space=vmem, size = 0x8000, scoped, tag = 'input window, operand 2, single buffered']
    #allocation7 [shape = 's32[1]{0}', space=sflag, size = 0x4, scoped, tag = 'scoped memory for tpu_custom_call.1']
    #allocation8 [shape = 'u8[8192]{0}', space=vmem, size = 0x2000, scoped, tag = 'output window, operand 0, single buffered']
    %8 = vsyncpa [#allocation4], 0
    %9 = vsyncpa [#allocation7], 0
    %10 = vsyncpa [#allocation5], 0
    // Predicated region
    $region2: #{tpu_custom_call.1} parent=1 // pred_check
      _
    $region3: #{tpu_custom_call.1} parent=1 // pred_check_branch
      %12 = sbr.rel (0) target = $region5
    $region4: #{tpu_custom_call.1} parent=1 // pred_region
      %s14 = ssub.s32 256, 256
      %15 = vsyncadd [#allocation4], %s14
      %s16 = sshll.u32 [#allocation3], 4
      %s17 = int_to_ptr.vmem [resolvable:$true] %s16
      %22 = dma.hbm_to_vmem [thread:$0]  %s0, 256, %s17, [#allocation4], 128, 128, 8
    $region5: #{tpu_custom_call.1} parent=1 // pred_fallthru
      _
    // Predicated region
    $region6: #{tpu_custom_call.1} parent=1 // pred_check
      _
    $region7: #{tpu_custom_call.1} parent=1 // pred_check_branch
      %24 = sbr.rel (0) target = $region9
    $region8: #{tpu_custom_call.1} parent=1 // pred_region
      _
    $region9: #{tpu_custom_call.1} parent=1 // pred_fallthru
      _
    // Predicated region
    $region10: #{tpu_custom_call.1} parent=1 // pred_check
      _
    $region11: #{tpu_custom_call.1} parent=1 // pred_check_branch
      %26 = sbr.rel (0) target = $region13
    $region12: #{tpu_custom_call.1} parent=1 // pred_region
      %s28 = ssub.s32 1024, 1024
      %29 = vsyncadd [#allocation7], %s28
      %s30 = sshll.u32 [#allocation6], 4
      %s31 = int_to_ptr.vmem [resolvable:$true] %s30
      %36 = dma.hbm_to_vmem [thread:$0]  %s2, 1024, %s31, [#allocation7], 128, 128, 8
    $region13: #{tpu_custom_call.1} parent=1 // pred_fallthru
      _
    // Predicated region
    $region14: #{tpu_custom_call.1} parent=1 // pred_check
      _
    $region15: #{tpu_custom_call.1} parent=1 // pred_check_branch
      %38 = sbr.rel (0) target = $region17
    $region16: #{tpu_custom_call.1} parent=1 // pred_region
      %39 = dma.done [#allocation4], 256
    $region17: #{tpu_custom_call.1} parent=1 // pred_fallthru
      _
    // Predicated region
    $region18: #{tpu_custom_call.1} parent=1 // pred_check
      _
    $region19: #{tpu_custom_call.1} parent=1 // pred_check_branch
      %41 = sbr.rel (0) target = $region21
    $region20: #{tpu_custom_call.1} parent=1 // pred_region
      %42 = dma.done [#allocation7], 1024
    $region21: #{tpu_custom_call.1} parent=1 // pred_fallthru
      _
    %p44 = scmp.eq.s32.totalorder 0, 0
    // Predicated region
    $region22: #{tpu_custom_call.1} parent=1 // pred_check
      %p45 = pneg %p44
    $region23: #{tpu_custom_call.1} parent=1 // pred_check_branch
      %47 = sbr.rel (%p45) target = $region25
    $region24: #{tpu_custom_call.1} parent=1 // pred_region
      %v48 = vld [vmem:[#allocation3] sm:$0xff]
      %v49 = vld [vmem:[#allocation3 + $0x8] sm:$0xff]
      %v50 = vmul.f32 %v48, %v48
      %v51 = vmul.f32 %v49, %v49
      %vm52 = vcmask 523264
      %v53 = vsel %vm52, %v50, 0.0
      %54 = vadd.xlane.f32.xlu0 %v53
      %v55 = vpop.xlane.xlu0 %54
      %v56 = vsel %vm52, %v51, 0.0
      %57 = vadd.xlane.f32.xlu0 %v56
      %v58 = vpop.xlane.xlu0 %57
      %v59 = vrcp.pop 64.0
      %v60 = vmul.f32 %v55, %v59
      %v61 = vmul.f32 %v58, %v59
      %v62 = vadd.f32 %v60, 1e-06
      %v63 = vadd.f32 %v61, 1e-06
      %v64 = vrsqrt.pop %v62
      %v65 = vrsqrt.pop %v63
      %v66 = vmul.f32 %v48, %v64
      %v67 = vmul.f32 %v49, %v65
      %v68 = vld [vmem:[%s1] sm:$0x1]
      %v70 = vlaneseq
      %v71 = vshrl.u32 %v70, 7
      %v72 = vsub.s32 0, %v71
      %v73 = vrot.slane %v68, %v72
      %v75 = vmul.f32 %v66, %v73
      %v76 = vmul.f32 %v67, %v73
      %v77 = vpack.c.bf16 %v76, %v75
      %78 = vst.msk [vmem:[#allocation2] sm:$0xff] %vm52, %v77
    $region25: #{tpu_custom_call.1} parent=1 // pred_fallthru
      _
    %v79 = vld [vmem:[#allocation2] sm:$0xff]
    %v80 = vld [vmem:[#allocation6] sm:$0xff]
    %v81 = vld [vmem:[#allocation6 + $0x8] sm:$0xff]
    %v82 = vld [vmem:[#allocation6 + $0x10] sm:$0xff]
    %v83 = vld [vmem:[#allocation6 + $0x18] sm:$0xff]
    %v84 = vld [vmem:[#allocation6 + $0x20] sm:$0xff]
    %v85 = vld [vmem:[#allocation6 + $0x28] sm:$0xff]
    %v86 = vld [vmem:[#allocation6 + $0x30] sm:$0xff]
    %v87 = vld [vmem:[#allocation6 + $0x38] sm:$0xff]
    %v96 = vunpack.c.l.b16 %v80
    %v97 = vunpack.c.h.b16 %v80
    %v98 = vunpack.c.l.b16 %v81
    %v99 = vunpack.c.h.b16 %v81
    %v100 = vunpack.c.l.b16 %v82
    %v101 = vunpack.c.h.b16 %v82
    %v102 = vunpack.c.l.b16 %v83
    %v103 = vunpack.c.h.b16 %v83
    %v104 = vunpack.c.l.b16 %v84
    %v105 = vunpack.c.h.b16 %v84
    %v106 = vunpack.c.l.b16 %v85
    %v107 = vunpack.c.h.b16 %v85
    %v108 = vunpack.c.l.b16 %v86
    %v109 = vunpack.c.h.b16 %v86
    %v110 = vunpack.c.l.b16 %v87
    %v111 = vunpack.c.h.b16 %v87
    %v112 = vpack.c.b16 %v98, %v96
    %v113 = vpack.c.b16 %v99, %v97
    %v114 = vpack.c.b16 %v102, %v100
    %v115 = vpack.c.b16 %v103, %v101
    %v116 = vpack.c.b16 %v106, %v104
    %v117 = vpack.c.b16 %v107, %v105
    %v118 = vpack.c.b16 %v110, %v108
    %v119 = vpack.c.b16 %v111, %v109
    %vm128 = vcmask 523264
    %v130 = vsel %vm128, %v79, 0
    %132 = vmatprep.subr.bf16.mxu0 %v113
    %133 = vmatpush1.bf16.msra.mxu0 %v112
    %134 = vmatprep.subr.bf16.mxu0 %v115
    %135 = vmatpush1.bf16.msra.mxu0 %v114
    %136 = vmatprep.subr.bf16.mxu0 %v117
    %137 = vmatpush1.bf16.msra.mxu0 %v116
    %138 = vmatprep.subr.bf16.mxu0 %v119
    %139 = vmatpush1.bf16.msra.mxu0 %v118
    %140 = vmatprep.subr.bf16.mxu0 0
    %141 = vmatpush1.bf16.msra.mxu0 0
    %142 = vmatprep.subr.bf16.mxu0 0
    %143 = vmatpush1.bf16.msra.mxu0 0
    %144 = vmatprep.subr.bf16.mxu0 0
    %145 = vmatpush1.bf16.msra.mxu0 0
    %146 = vmatprep.subr.bf16.mxu0 0
    %147 = vmatpush1.bf16.msra.mxu0 0
    %148 = vmatprep.subr.bf16.mxu0 0
    %149 = vmatpush1.bf16.msra.mxu0 0
    %150 = vmatprep.subr.bf16.mxu0 0
    %151 = vmatpush1.bf16.msra.mxu0 0
    %152 = vmatprep.subr.bf16.mxu0 0
    %153 = vmatpush1.bf16.msra.mxu0 0
    %154 = vmatprep.subr.bf16.mxu0 0
    %155 = vmatpush1.bf16.msra.mxu0 0
    %156 = vmatprep.subr.bf16.mxu0 0
    %157 = vmatpush1.bf16.msra.mxu0 0
    %158 = vmatprep.subr.bf16.mxu0 0
    %159 = vmatpush1.bf16.msra.mxu0 0
    %160 = vmatprep.subr.bf16.mxu0 0
    %161 = vmatpush1.bf16.msra.mxu0 0
    %162 = vmatprep.subr.bf16.mxu0 0
    %163 = vmatpush1.bf16.msra.mxu0 0
    %164 = vmatprep.mubr.bf16.mxu0 0
    %165 = vmatmul.mubr.bf16.gmra.mrb[0].mxu0 %v130
    %v166 = vpop.f32.mrb[0].mxu0
    %v167 = vadd.f32 0.0, %v166
    %v168 = vpop.f32.mrb[0].mxu0
    %v169 = vadd.f32 0.0, %v168
    %v170 = vpop.f32.mrb[0].mxu0
    %v171 = vadd.f32 0.0, %v170
    %v172 = vpop.f32.mrb[0].mxu0
    %v173 = vadd.f32 0.0, %v172
    %174 = vdwg.mxu0
    %v175 = vpack.c.bf16 %v171, %v167
    %v176 = vpack.c.bf16 %v173, %v169
    %v179 = vunpack.c.l.b16 %v175
    %v180 = vunpack.c.l.b16 %v176
    %v181 = vunpack.c.h.b16 %v175
    %v182 = vunpack.c.h.b16 %v176
    %v183 = vpack.c.b16 %v180, %v179
    %v184 = vpack.c.b16 %v182, %v181
    %vm187 = vcmask 1043456
    %vm188 = vcmask 523268
    %vm189 = vmor %vm188, %vm187
    %190 = vst.msk [vmem:[#allocation8] sm:$0xff] %vm189, %v183
    %191 = vst.msk [vmem:[#allocation8 + $0x8] sm:$0xff] %vm189, %v184
    // Predicated region
    $region26: #{tpu_custom_call.1} parent=1 // pred_check
      _
    $region27: #{tpu_custom_call.1} parent=1 // pred_check_branch
      %193 = sbr.rel (0) target = $region29
    $region28: #{tpu_custom_call.1} parent=1 // pred_region
      %s195 = ssub.s32 256, 256
      %196 = vsyncadd [#allocation5], %s195
      %s197 = sshll.u32 [#allocation8], 4
      %s198 = int_to_ptr.vmem [resolvable:$true] %s197
      %203 = dma.vmem_to_hbm [thread:$0]  %s198, 256, %s3, [#allocation5], 128, 128, 8
    $region29: #{tpu_custom_call.1} parent=1 // pred_fallthru
      _
    // Predicated region
    $region30: #{tpu_custom_call.1} parent=1 // pred_check
      _
    $region31: #{tpu_custom_call.1} parent=1 // pred_check_branch
      %205 = sbr.rel (0) target = $region33
    $region32: #{tpu_custom_call.1} parent=1 // pred_region
      %206 = dma.done [#allocation5], 256
    $region33: #{tpu_custom_call.1} parent=1 // pred_fallthru
      _
    %207 = vsyncpa [#allocation4], 1
    %208 = vsyncpa [#allocation7], 1
    %209 = vsyncpa [#allocation5], 1

</llo_original>
